<compile_context>
chip_gen: v7x
topology: tpu7x:2x2x1
jax: 0.10.0
libtpu: 0.0.40
codegen_flags: <defaults>
</compile_context>

<pallas_src>
import functools

import jax
import jax.numpy as jnp
from jax.experimental import pallas as pl
from jax.experimental.pallas import tpu as pltpu


def _round_up(x, m):
    return ((x + m - 1) // m) * m


# ----------------------------------------------------------------------------
# Fused Pallas kernel: stem-conv matmul + SiLU + global-avg-pool + classifier
# ----------------------------------------------------------------------------
def _fused_stem_pool_cls_kernel(p_ref, w_ref, b_ref, wc_ref, bc_ref,
                                o_ref, acc_ref, *, inv_hw):
    # grid = (batch, hw_tiles); axis 1 is the pooled reduction ("arbitrary").
    t = pl.program_id(1)

    @pl.when(t == 0)
    def _():
        acc_ref[...] = jnp.zeros_like(acc_ref)

    # (tile_hw, Kp=32) bf16 patches x (Kp, Cpad=128) bf16 weights -> f32 (MXU).
    x = p_ref[0]
    acts = jnp.dot(x, w_ref[...], preferred_element_type=jnp.float32)
    acts = acts + b_ref[...]                      # (tile_hw, Cpad) f32
    acts = acts * jax.nn.sigmoid(acts)            # SiLU in f32 (BN = identity)

    # Deferred pool reduce: vreg-aligned (tile_hw//8, 8, Cpad) view summed over
    # the major axis = pure VPU adds into the (8, Cpad) accumulator.
    th, cp = acts.shape
    acc_ref[...] += jnp.sum(acts.reshape(th // 8, 8, cp), axis=0)

    @pl.when(t == pl.num_programs(1) - 1)
    def _():
        # Single sublane collapse (XLU) + mean scale, then classifier dot.
        pooled = jnp.sum(acc_ref[...], axis=0, keepdims=True) * inv_hw
        logits = jnp.dot(pooled, wc_ref[...].astype(jnp.float32),
                         preferred_element_type=jnp.float32) + bc_ref[...]
        o_ref[0] = logits                         # (1, Npad) lane-dense store


def fused_stem_pool_classify(patches, w2d, b2d, w_cls, b_cls, *,
                             tile_hw, hw_valid):
    """patches: (B, HW_pad, Kp) bf16; w2d: (Kp, Cpad) bf16; b2d: (1, Cpad) f32;
    w_cls: (Cpad, Npad) bf16; b_cls: (1, Npad) f32  ->  (B, Npad) f32 logits."""
    B, HW_pad, Kp = patches.shape
    _, Cpad = w2d.shape
    _, Npad = w_cls.shape
    assert tile_hw % 16 == 0 and HW_pad % tile_hw == 0
    n_tiles = HW_pad // tile_hw

    kernel = functools.partial(_fused_stem_pool_cls_kernel,
                               inv_hw=1.0 / hw_valid)

    flops = (2 * B * HW_pad * Kp * Cpad + 4 * B * HW_pad * Cpad
             + 2 * B * Cpad * Npad)
    bytes_accessed = (patches.size * 2 + w2d.size * 2 + b2d.size * 4
                      + w_cls.size * 2 + b_cls.size * 4 + B * Npad * 4)

    # 3-deep buffering on the only per-step-varying stream (when useful).
    patch_spec = pl.BlockSpec((1, tile_hw, Kp), lambda b, t: (b, t, 0),
                              pipeline_mode=pl.Buffered(min(3, max(2, n_tiles))))

    out = pl.pallas_call(
        kernel,
        out_shape=jax.ShapeDtypeStruct((B, 1, Npad), jnp.float32),
        grid_spec=pltpu.PrefetchScalarGridSpec(
            num_scalar_prefetch=0,
            grid=(B, n_tiles),
            in_specs=[
                patch_spec,
                pl.BlockSpec((Kp, Cpad), lambda b, t: (0, 0)),
                pl.BlockSpec((1, Cpad), lambda b, t: (0, 0)),
                pl.BlockSpec((Cpad, Npad), lambda b, t: (0, 0)),
                pl.BlockSpec((1, Npad), lambda b, t: (0, 0)),
            ],
            out_specs=pl.BlockSpec((1, 1, Npad), lambda b, t: (b, 0, 0)),
            scratch_shapes=[pltpu.VMEM((8, Cpad), jnp.float32)],
        ),
        compiler_params=pltpu.CompilerParams(
            dimension_semantics=("parallel", "arbitrary"),
            vmem_limit_bytes=32 * 1024 * 1024,
        ),
        cost_estimate=pl.CostEstimate(
            flops=int(flops),
            transcendentals=int(B * HW_pad * Cpad),
            bytes_accessed=int(bytes_accessed),
        ),
    )(patches, w2d, b2d, w_cls, b_cls)
    return out[:, 0, :]


# ----------------------------------------------------------------------------
# Glue (plain JAX): layout transpose, im2col, padding, parameter construction
# ----------------------------------------------------------------------------
def _im2col(x_nhwc, k, stride, pad):
    # x: (B, H, W, C) -> (B, Ho, Wo, k*k*C), patch order (kh, kw, c)
    x = jnp.pad(x_nhwc, ((0, 0), (pad, pad), (pad, pad), (0, 0)))
    B, Hp, Wp, C = x.shape
    Ho = (Hp - k) // stride + 1
    Wo = (Wp - k) // stride + 1
    cols = []
    for kh in range(k):
        for kw in range(k):
            cols.append(
                x[:, kh:kh + stride * Ho:stride, kw:kw + stride * Wo:stride, :])
    patches = jnp.stack(cols, axis=3)                 # (B, Ho, Wo, k*k, C)
    return patches.reshape(B, Ho, Wo, k * k * C), Ho, Wo


def init_params(key, c_in, c_stem, n_class, k=3):
    k1, kb, k2, k3 = jax.random.split(key, 4)
    # stem conv weight in PyTorch layout (Cout, Cin, Kh, Kw)
    w_stem = jax.random.normal(k1, (c_stem, c_in, k, k), jnp.float32)
    w_stem = w_stem * (2.0 / (c_in * k * k)) ** 0.5
    b_stem = 0.1 * jax.random.normal(kb, (c_stem,), jnp.float32)
    # classifier nn.Linear(in_features=c_stem, n_class): weight (n_class, c_stem)
    bound = 1.0 / (c_stem ** 0.5)
    w_cls = jax.random.uniform(k2, (n_class, c_stem), jnp.float32, -bound, bound)
    b_cls = jax.random.uniform(k3, (n_class,), jnp.float32, -bound, bound)
    return dict(w_stem=w_stem, b_stem=b_stem, w_cls=w_cls, b_cls=b_cls)


def mask_classifier_forward(x_nchw, params, *, tile_hw=None):
    c_stem, c_in, k, _ = params["w_stem"].shape
    n_class = params["w_cls"].shape[0]

    # NCHW -> NHWC, im2col the 3x3/s2 stem conv.
    x = jnp.transpose(x_nchw, (0, 2, 3, 1)).astype(jnp.float32)
    patches, Ho, Wo = _im2col(x, k=k, stride=2, pad=1)
    B = x.shape[0]
    HW = Ho * Wo
    K = k * k * c_in

    # Contraction padded only to 32 (bf16 sublane multiple); outputs to 128.
    Kp = _round_up(K, 32)
    Cpad = _round_up(c_stem, 128)
    Npad = _round_up(n_class, 128)

    if tile_hw is None:
        tile_hw = min(2048, _round_up(HW, 16))
    if tile_hw % 16 != 0:
        raise ValueError("tile_hw must be a multiple of 16")
    HW_pad = _round_up(HW, tile_hw)
    n_pad = HW_pad - HW

    patches3d = patches.reshape(B, HW, K)
    patches_p = jnp.pad(patches3d, ((0, 0), (0, n_pad), (0, Kp - K)))
    patches_p = patches_p.astype(jnp.bfloat16)

    # (Cout, Cin, Kh, Kw) -> (Kh, Kw, Cin, Cout) -> (K, Cout), matching (kh,kw,c)
    w2d = jnp.transpose(params["w_stem"], (2, 3, 1, 0)).reshape(K, c_stem)
    w2d_p = jnp.pad(w2d, ((0, Kp - K), (0, Cpad - c_stem))).astype(jnp.bfloat16)
    b2d_p = jnp.pad(params["b_stem"], (0, Cpad - c_stem)).reshape(1, Cpad)
    b2d_p = b2d_p.astype(jnp.float32)

    w_cls = jnp.transpose(params["w_cls"])            # (c_stem, n_class)
    w_cls_p = jnp.pad(w_cls, ((0, Cpad - c_stem), (0, Npad - n_class)))
    w_cls_p = w_cls_p.astype(jnp.bfloat16)            # bf16 storage, f32 accum
    b_cls_p = jnp.pad(params["b_cls"], (0, Npad - n_class)).reshape(1, Npad)
    b_cls_p = b_cls_p.astype(jnp.float32)

    # Padded HW rows are all-zero patches -> contribute exactly SiLU(b_stem)
    # each to the pooled sum.  Fold the exact correction into the classifier
    # bias so the kernel needs no masking (zero in-kernel cost).
    if n_pad:
        silu_b = b2d_p * jax.nn.sigmoid(b2d_p)                       # (1, Cpad)
        b_cls_p = b_cls_p - (n_pad / HW) * (silu_b @ w_cls_p.astype(jnp.float32))

    logits_pad = fused_stem_pool_classify(
        patches_p, w2d_p, b2d_p, w_cls_p, b_cls_p,
        tile_hw=tile_hw, hw_valid=HW)
    return logits_pad[:, :n_class]


def _reference_forward(x_nchw, params):
    # Pure-JAX f32 reference of the same forward pass (for numerical check).
    c_stem, c_in, k, _ = params["w_stem"].shape
    x = jnp.transpose(x_nchw, (0, 2, 3, 1)).astype(jnp.float32)
    patches, Ho, Wo = _im2col(x, k=k, stride=2, pad=1)
    B = x.shape[0]
    w2d = jnp.transpose(params["w_stem"], (2, 3, 1, 0)).reshape(-1, c_stem)
    acts = patches.reshape(B, Ho * Wo, -1) @ w2d + params["b_stem"]
    acts = acts * jax.nn.sigmoid(acts)
    pooled = acts.mean(axis=1)
    return pooled @ params["w_cls"].T + params["b_cls"]


if __name__ == "__main__":
    key = jax.random.PRNGKey(0)
    k_x, k_p = jax.random.split(key)

    B, C_in, H, W = 2, 3, 16, 16
    c_stem, n_class = 32, 5

    x = jax.random.normal(k_x, (B, C_in, H, W), jnp.float32)
    params = init_params(k_p, C_in, c_stem, n_class)

    ref = _reference_forward(x, params)

    # Multi-tile reduction path with padded HW rows: HW=64, tile_hw=48 ->
    # 2 tiles, 32 padded rows whose SiLU(bias) is folded out via the bias.
    logits = mask_classifier_forward(x, params, tile_hw=48)
    jax.block_until_ready(logits)
    assert logits.shape == (B, n_class)
    assert jnp.allclose(logits, ref, atol=5e-2, rtol=5e-2), (
        "mismatch vs reference (tiled path): max abs err = "
        f"{float(jnp.max(jnp.abs(logits - ref)))}")

    # Default single-tile path (no HW padding).
    logits2 = mask_classifier_forward(x, params)
    jax.block_until_ready(logits2)
    assert jnp.allclose(logits2, ref, atol=5e-2, rtol=5e-2), (
        "mismatch vs reference (default path): max abs err = "
        f"{float(jnp.max(jnp.abs(logits2 - ref)))}")

    print("KERNEL_OK")
</pallas_src>

<mosaic_0001>
module attributes {stable_mosaic.version = 11 : i64} {
  func.func @_fused_stem_pool_cls_kernel(%arg0: i32, %arg1: i32, %arg2: memref<1x48x32xbf16, #tpu.memory_space<vmem>>, %arg3: memref<32x128xbf16, #tpu.memory_space<vmem>>, %arg4: memref<1x128xf32, #tpu.memory_space<vmem>>, %arg5: memref<128x128xbf16, #tpu.memory_space<vmem>>, %arg6: memref<1x128xf32, #tpu.memory_space<vmem>>, %arg7: memref<1x1x128xf32, #tpu.memory_space<vmem>>, %arg8: memref<8x128xf32, #tpu.memory_space<vmem>>) attributes {dimension_semantics = [#tpu.dimension_semantics<parallel>, #tpu.dimension_semantics<arbitrary>], iteration_bounds = array<i64: 2, 2>, scalar_prefetch = 0 : i64, scratch_operands = 1 : i64, tpu.core_type = #tpu.core_type<tc>, window_params = [{pipeline_mode = #tpu.pipeline_mode<double_buffered>, transform_indices = @transform_0, window_bounds = array<i64: 1, 48, 32>}, {pipeline_mode = #tpu.pipeline_mode<synchronous>, transform_indices = @transform_1, window_bounds = array<i64: 32, 128>}, {pipeline_mode = #tpu.pipeline_mode<synchronous>, transform_indices = @transform_2, window_bounds = array<i64: 1, 128>}, {pipeline_mode = #tpu.pipeline_mode<synchronous>, transform_indices = @transform_3, window_bounds = array<i64: 128, 128>}, {pipeline_mode = #tpu.pipeline_mode<synchronous>, transform_indices = @transform_4, window_bounds = array<i64: 1, 128>}, {transform_indices = @transform_5, window_bounds = array<i64: 1, 1, 128>}]} {
    %c0_i32 = arith.constant 0 : i32
    %0 = arith.cmpi eq, %arg1, %c0_i32 : i32
    %1 = arith.extui %0 : i1 to i32
    %c0_i32_0 = arith.constant 0 : i32
    %2 = arith.cmpi ne, %1, %c0_i32_0 : i32
    scf.if %2 {
      %cst_14 = arith.constant 0.000000e+00 : f32
      %24 = vector.broadcast %cst_14 : f32 to vector<8x128xf32>
      %c0_15 = arith.constant 0 : index
      %c0_16 = arith.constant 0 : index
      %25 = vector.load %arg8[%c0_15, %c0_16] : memref<8x128xf32, #tpu.memory_space<vmem>>, vector<8x128xf32>
      tpu.vector_store %arg8[%c0_15, %c0_16], %24 {strides = array<i32>} : memref<8x128xf32, #tpu.memory_space<vmem>>, vector<8x128xf32>,
    } else {
    }
    %c0 = arith.constant 0 : index
    %c0_1 = arith.constant 0 : index
    %c0_2 = arith.constant 0 : index
    %3 = vector.load %arg2[%c0, %c0_1, %c0_2] : memref<1x48x32xbf16, #tpu.memory_space<vmem>>, vector<1x48x32xbf16>
    %4 = vector.shape_cast %3 : vector<1x48x32xbf16> to vector<48x32xbf16>
    %c0_3 = arith.constant 0 : index
    %c0_4 = arith.constant 0 : index
    %5 = vector.load %arg3[%c0_3, %c0_4] : memref<32x128xbf16, #tpu.memory_space<vmem>>, vector<32x128xbf16>
    %cst = arith.constant dense<0.000000e+00> : vector<48x128xf32>
    %6 = tpu.matmul %4, %5, %cst {dimension_numbers = #tpu.dot_dimension_numbers<[1], [0], [0], [1], [0, 0, 1, 1], [], []>} : vector<48x32xbf16>, vector<32x128xbf16>, vector<48x128xf32> -> vector<48x128xf32>
    %c0_5 = arith.constant 0 : index
    %c0_6 = arith.constant 0 : index
    %7 = vector.load %arg4[%c0_5, %c0_6] : memref<1x128xf32, #tpu.memory_space<vmem>>, vector<1x128xf32>
    %8 = vector.broadcast %7 : vector<1x128xf32> to vector<48x128xf32>
    %9 = arith.addf %6, %8 : vector<48x128xf32>
    %10 = arith.negf %9 : vector<48x128xf32>
    %11 = math.exp %10 : vector<48x128xf32>
    %cst_7 = arith.constant 1.000000e+00 : f32
    %12 = vector.broadcast %cst_7 : f32 to vector<48x128xf32>
    %13 = arith.addf %12, %11 : vector<48x128xf32>
    %14 = arith.divf %12, %13 : vector<48x128xf32>
    %15 = arith.mulf %9, %14 : vector<48x128xf32>
    %c0_8 = arith.constant 0 : index
    %c0_9 = arith.constant 0 : index
    %16 = vector.load %arg8[%c0_8, %c0_9] : memref<8x128xf32, #tpu.memory_space<vmem>>, vector<8x128xf32>
    %17 = vector.shape_cast %15 : vector<48x128xf32> to vector<6x8x128xf32>
    %cst_10 = arith.constant dense<0.000000e+00> : vector<8x128xf32>
    %18 = vector.multi_reduction <add>, %17, %cst_10 [0] : vector<6x8x128xf32> to vector<8x128xf32>
    %19 = arith.addf %16, %18 : vector<8x128xf32>
    %c0_11 = arith.constant 0 : index
    %c0_12 = arith.constant 0 : index
    %20 = vector.load %arg8[%c0_11, %c0_12] : memref<8x128xf32, #tpu.memory_space<vmem>>, vector<8x128xf32>
    tpu.vector_store %arg8[%c0_11, %c0_12], %19 {strides = array<i32>} : memref<8x128xf32, #tpu.memory_space<vmem>>, vector<8x128xf32>,
    %c1_i32 = arith.constant 1 : i32
    %21 = arith.cmpi eq, %arg1, %c1_i32 : i32
    %22 = arith.extui %21 : i1 to i32
    %c0_i32_13 = arith.constant 0 : i32
    %23 = arith.cmpi ne, %22, %c0_i32_13 : i32
    scf.if %23 {
      %c0_14 = arith.constant 0 : index
      %c0_15 = arith.constant 0 : index
      %24 = vector.load %arg8[%c0_14, %c0_15] : memref<8x128xf32, #tpu.memory_space<vmem>>, vector<8x128xf32>
      %cst_16 = arith.constant dense<0.000000e+00> : vector<128xf32>
      %25 = vector.multi_reduction <add>, %24, %cst_16 [0] : vector<8x128xf32> to vector<128xf32>
      %26 = vector.shape_cast %25 : vector<128xf32> to vector<1x128xf32>
      %cst_17 = arith.constant 1.562500e-02 : f32
      %27 = vector.broadcast %cst_17 : f32 to vector<1x128xf32>
      %28 = arith.mulf %26, %27 : vector<1x128xf32>
      %c0_18 = arith.constant 0 : index
      %c0_19 = arith.constant 0 : index
      %29 = vector.load %arg5[%c0_18, %c0_19] : memref<128x128xbf16, #tpu.memory_space<vmem>>, vector<128x128xbf16>
      %30 = arith.extf %29 : vector<128x128xbf16> to vector<128x128xf32>
      %cst_20 = arith.constant dense<0.000000e+00> : vector<1x128xf32>
      %31 = tpu.matmul %28, %30, %cst_20 {dimension_numbers = #tpu.dot_dimension_numbers<[1], [0], [0], [1], [0, 0, 1, 1], [], []>} : vector<1x128xf32>, vector<128x128xf32>, vector<1x128xf32> -> vector<1x128xf32>
      %c0_21 = arith.constant 0 : index
      %c0_22 = arith.constant 0 : index
      %32 = vector.load %arg6[%c0_21, %c0_22] : memref<1x128xf32, #tpu.memory_space<vmem>>, vector<1x128xf32>
      %33 = arith.addf %31, %32 : vector<1x128xf32>
      %c0_23 = arith.constant 0 : index
      %c0_24 = arith.constant 0 : index
      %c0_25 = arith.constant 0 : index
      %34 = vector.load %arg7[%c0_23, %c0_24, %c0_25] : memref<1x1x128xf32, #tpu.memory_space<vmem>>, vector<1x1x128xf32>
      %35 = vector.shape_cast %34 : vector<1x1x128xf32> to vector<1x128xf32>
      %36 = vector.shape_cast %33 : vector<1x128xf32> to vector<1x1x128xf32>
      tpu.vector_store %arg7[%c0_23, %c0_24, %c0_25], %36 {strides = array<i32>} : memref<1x1x128xf32, #tpu.memory_space<vmem>>, vector<1x1x128xf32>,
    } else {
    }
    return
  }
  func.func @transform_0(%arg0: i32, %arg1: i32) -> (i32, i32, i32) {
    %c0_i32 = arith.constant 0 : i32
    %c0_i32_0 = arith.constant 0 : i32
    return %arg0, %arg1, %c0_i32 : i32, i32, i32
  }
  func.func @transform_1(%arg0: i32, %arg1: i32) -> (i32, i32) {
    %c0_i32 = arith.constant 0 : i32
    %c0_i32_0 = arith.constant 0 : i32
    %c0_i32_1 = arith.constant 0 : i32
    return %c0_i32, %c0_i32_0 : i32, i32
  }
  func.func @transform_2(%arg0: i32, %arg1: i32) -> (i32, i32) {
    %c0_i32 = arith.constant 0 : i32
    %c0_i32_0 = arith.constant 0 : i32
    %c0_i32_1 = arith.constant 0 : i32
    return %c0_i32, %c0_i32_0 : i32, i32
  }
  func.func @transform_3(%arg0: i32, %arg1: i32) -> (i32, i32) {
    %c0_i32 = arith.constant 0 : i32
    %c0_i32_0 = arith.constant 0 : i32
    %c0_i32_1 = arith.constant 0 : i32
    return %c0_i32, %c0_i32_0 : i32, i32
  }
  func.func @transform_4(%arg0: i32, %arg1: i32) -> (i32, i32) {
    %c0_i32 = arith.constant 0 : i32
    %c0_i32_0 = arith.constant 0 : i32
    %c0_i32_1 = arith.constant 0 : i32
    return %c0_i32, %c0_i32_0 : i32, i32
  }
  func.func @transform_5(%arg0: i32, %arg1: i32) -> (i32, i32, i32) {
    %c0_i32 = arith.constant 0 : i32
    %c0_i32_0 = arith.constant 0 : i32
    %c0_i32_1 = arith.constant 0 : i32
    return %arg0, %c0_i32, %c0_i32_0 : i32, i32, i32
  }
}

</mosaic_0001>

<llo_original>
// kernel: tpu_custom_call.1
$region0: #{tpu_custom_call.1}
  #allocation0 [shape = 'u32[]', space=smem, size = 0x4, offset = 0x4, fixed_abs, tag = 'smem constant byte address 0x4 - core index']
  #allocation1 [shape = 'u32[144,128]{1,0:T(1,128)}', space=vmem, size = 0x12000, scoped, tag = 'internal scratch']
  #allocation2 [shape = 'f32[8,128]{1,0:T(8,128)}', space=vmem, size = 0x1000, scoped, tag = 'scratch operand']
  %s0 = inlined_call_operand.vmem [shape: bf16[2,96,32], index: 0, kind: input, shape index: {}]
  %s1 = inlined_call_operand.vmem [shape: bf16[32,128], index: 1, kind: input, shape index: {}]
  %s2 = inlined_call_operand.vmem [shape: f32[1,128], index: 2, kind: input, shape index: {}]
  %s3 = inlined_call_operand.vmem [shape: bf16[128,128], index: 3, kind: input, shape index: {}]
  %s4 = inlined_call_operand.vmem [shape: f32[1,128], index: 4, kind: input, shape index: {}]
  %s5 = inlined_call_operand.hbm [shape: f32[2,1,128], index: 5, kind: output, shape index: {}]
  %s6 = sld [smem:[#allocation0]]
  $region61: #{tpu_custom_call.1} parent=0
    _
  %s8 = ssub.s32 1, %s6
  %s9 = scalar_select 0, %s8, %s6
  $region1: #{tpu_custom_call.1} parent=0
    #allocation3 [shape = 'u8[1024]{0}', space=vmem, size = 0x400, scoped, tag = 'output window, operand 0']
    #allocation4 [shape = 's32[2]{0}', space=sflag, size = 0x8, scoped, tag = 'scoped memory for tpu_custom_call.1']
    %10 = vsyncpa [#allocation4], 0
    %s11 = scalar_lea.sflag [#allocation4], 1
    %12 = vsyncpa %s11, 0
    loop: start=0, step=1, limit=6
    $region2: #{tpu_custom_call.1} parent=1 // loop_pre_header
      _
    $region3: #{tpu_custom_call.1} parent=1 // loop_header
      %s14 = sphi 0, %s18
      %p15 = scmp.ge.s32.totalorder %s14, 6
      %s21 = sphi 0, %s33
      %s22 = sphi 0, %s29
      %s23 = sphi 0, %s21
      %s24 = sphi 0, %s22
      %s25 = sphi 0, %s23
      %s26 = sphi 0, %s24
      %s38 = sphi 0, %s40
      %s41 = sphi 0, %s38
      %s42 = sphi 0, %s41
      %s58 = sphi 0, %s42
      %s62 = sphi 0, %s62
      %s64 = sphi 0, %s62
      %s65 = sphi 0, %s64
      %s79 = sphi 0, %s65
      %s83 = sphi 0, %s83
      %s85 = sphi 0, %s83
      %s86 = sphi 0, %s85
      %s100 = sphi 0, %s86
      %s104 = sphi 0, %s104
      %s106 = sphi 0, %s104
      %s107 = sphi 0, %s106
      %s121 = sphi 0, %s107
      %s125 = sphi 0, %s125
      %s127 = sphi 0, %s125
      %s128 = sphi 0, %s127
      %s142 = sphi 0, %s128
      %s148 = sphi 0, %s150
      %s151 = sphi 0, %s148
      %s152 = sphi 0, %s151
      %s168 = sphi 0, %s152
    $region4: #{tpu_custom_call.1} parent=1 // loop_header_branch
      %17 = sbr.rel (%p15) target = $region8
    $region5: #{tpu_custom_call.1} parent=1 // loop_body
      %s19 = ssub.s32 %s14, 1
      %s20 = ssub.s32 %s14, 2
      %s27 = sadd.s32 1, %s22
      %p28 = scmp.ge.s32.totalorder %s27, 2
      %s29 = scalar_select %p28, 0, %s27
      %s30 = sadd.s32 1, %s21
      %s31 = scalar_select %p28, %s30, %s21
      %p32 = scmp.ge.s32.totalorder %s31, 2
      %s33 = scalar_select %p32, 0, %s31
      %s34 = ssub.s32 %s21, %s33
      %s35 = ssub.s32 %s22, %s29
      %s36 = sor.u32 %s34, %s35
      %p37 = scmp.eq.s32.totalorder %s36, 0
      %s39 = sadd.s32 %s38, 1
      %s40 = scalar_select %p37, %s38, %s39
      %p43 = pneg %p37
      %p44 = scmp.eq.s32.totalorder %s14, 3
      %p45 = por %p43, %p44
      %p46 = scmp.ne.s32.totalorder %s38, %s41
      %p47 = scmp.eq.s32.totalorder %s14, 0
      %p48 = por %p46, %p47
      %p49 = scmp.ne.s32.totalorder %s38, %s41
      %p50 = scmp.eq.s32.totalorder %s19, 3
      %p51 = por %p49, %p50
      %p52 = scmp.ne.s32.totalorder %s41, %s42
      %p53 = scmp.eq.s32.totalorder %s19, 0
      %p54 = por %p52, %p53
      %p55 = scmp.ne.s32.totalorder %s41, %s42
      %p56 = scmp.eq.s32.totalorder %s20, 3
      %p57 = por %p55, %p56
      %p59 = scmp.ne.s32.totalorder %s42, %s58
      %p60 = scmp.eq.s32.totalorder %s20, 0
      %p61 = por %p59, %p60
      %s63 = sadd.s32 %s62, 1
      %p66 = scmp.eq.s32.totalorder %s14, 3
      %p67 = scmp.ne.s32.totalorder %s62, %s64
      %p68 = scmp.eq.s32.totalorder %s14, 0
      %p69 = por %p67, %p68
      %p70 = scmp.ne.s32.totalorder %s62, %s64
      %p71 = scmp.eq.s32.totalorder %s19, 3
      %p72 = por %p70, %p71
      %p73 = scmp.ne.s32.totalorder %s64, %s65
      %p74 = scmp.eq.s32.totalorder %s19, 0
      %p75 = por %p73, %p74
      %p76 = scmp.ne.s32.totalorder %s64, %s65
      %p77 = scmp.eq.s32.totalorder %s20, 3
      %p78 = por %p76, %p77
      %p80 = scmp.ne.s32.totalorder %s65, %s79
      %p81 = scmp.eq.s32.totalorder %s20, 0
      %p82 = por %p80, %p81
      %s84 = sadd.s32 %s83, 1
      %p87 = scmp.eq.s32.totalorder %s14, 3
      %p88 = scmp.ne.s32.totalorder %s83, %s85
      %p89 = scmp.eq.s32.totalorder %s14, 0
      %p90 = por %p88, %p89
      %p91 = scmp.ne.s32.totalorder %s83, %s85
      %p92 = scmp.eq.s32.totalorder %s19, 3
      %p93 = por %p91, %p92
      %p94 = scmp.ne.s32.totalorder %s85, %s86
      %p95 = scmp.eq.s32.totalorder %s19, 0
      %p96 = por %p94, %p95
      %p97 = scmp.ne.s32.totalorder %s85, %s86
      %p98 = scmp.eq.s32.totalorder %s20, 3
      %p99 = por %p97, %p98
      %p101 = scmp.ne.s32.totalorder %s86, %s100
      %p102 = scmp.eq.s32.totalorder %s20, 0
      %p103 = por %p101, %p102
      %s105 = sadd.s32 %s104, 1
      %p108 = scmp.eq.s32.totalorder %s14, 3
      %p109 = scmp.ne.s32.totalorder %s104, %s106
      %p110 = scmp.eq.s32.totalorder %s14, 0
      %p111 = por %p109, %p110
      %p112 = scmp.ne.s32.totalorder %s104, %s106
      %p113 = scmp.eq.s32.totalorder %s19, 3
      %p114 = por %p112, %p113
      %p115 = scmp.ne.s32.totalorder %s106, %s107
      %p116 = scmp.eq.s32.totalorder %s19, 0
      %p117 = por %p115, %p116
      %p118 = scmp.ne.s32.totalorder %s106, %s107
      %p119 = scmp.eq.s32.totalorder %s20, 3
      %p120 = por %p118, %p119
      %p122 = scmp.ne.s32.totalorder %s107, %s121
      %p123 = scmp.eq.s32.totalorder %s20, 0
      %p124 = por %p122, %p123
      %s126 = sadd.s32 %s125, 1
      %p129 = scmp.eq.s32.totalorder %s14, 3
      %p130 = scmp.ne.s32.totalorder %s125, %s127
      %p131 = scmp.eq.s32.totalorder %s14, 0
      %p132 = por %p130, %p131
      %p133 = scmp.ne.s32.totalorder %s125, %s127
      %p134 = scmp.eq.s32.totalorder %s19, 3
      %p135 = por %p133, %p134
      %p136 = scmp.ne.s32.totalorder %s127, %s128
      %p137 = scmp.eq.s32.totalorder %s19, 0
      %p138 = por %p136, %p137
      %p139 = scmp.ne.s32.totalorder %s127, %s128
      %p140 = scmp.eq.s32.totalorder %s20, 3
      %p141 = por %p139, %p140
      %p143 = scmp.ne.s32.totalorder %s128, %s142
      %p144 = scmp.eq.s32.totalorder %s20, 0
      %p145 = por %p143, %p144
      %s146 = ssub.s32 %s21, %s33
      %p147 = scmp.eq.s32.totalorder %s146, 0
      %s149 = sadd.s32 %s148, 1
      %s150 = scalar_select %p147, %s148, %s149
      %p153 = pneg %p147
      %p154 = scmp.eq.s32.totalorder %s14, 3
      %p155 = por %p153, %p154
      %p156 = scmp.ne.s32.totalorder %s148, %s151
      %p157 = scmp.eq.s32.totalorder %s14, 0
      %p158 = por %p156, %p157
      %p159 = scmp.ne.s32.totalorder %s148, %s151
      %p160 = scmp.eq.s32.totalorder %s19, 3
      %p161 = por %p159, %p160
      %p162 = scmp.ne.s32.totalorder %s151, %s152
      %p163 = scmp.eq.s32.totalorder %s19, 0
      %p164 = por %p162, %p163
      %p165 = scmp.ne.s32.totalorder %s151, %s152
      %p166 = scmp.eq.s32.totalorder %s20, 3
      %p167 = por %p165, %p166
      %p169 = scmp.ne.s32.totalorder %s152, %s168
      %p170 = scmp.eq.s32.totalorder %s20, 0
      %p171 = por %p169, %p170
      %p172 = scmp.le.s32.totalorder 1, %s14
      %p173 = scmp.lt.s32.totalorder %s14, 5
      %p174 = pnand %p172, %p173
      %p175 = pneg %p174
      // Predicated region
      $region9: #{tpu_custom_call.1} parent=5 // pred_check
        _
      $region10: #{tpu_custom_call.1} parent=5 // pred_check_branch
        %177 = sbr.rel (%p174) target = $region12
      $region11: #{tpu_custom_call.1} parent=5 // pred_region
        %s178 = ssub.s32 %s14, 1
        // Predicated region
        $region13: #{tpu_custom_call.1} parent=11 // pred_check
          %p179 = pneg %p75
        $region14: #{tpu_custom_call.1} parent=11 // pred_check_branch
          %181 = sbr.rel (%p179) target = $region16
        $region15: #{tpu_custom_call.1} parent=11 // pred_region
          _
        $region16: #{tpu_custom_call.1} parent=11 // pred_fallthru
          _
        // Predicated region
        $region17: #{tpu_custom_call.1} parent=11 // pred_check
          %p182 = pneg %p96
        $region18: #{tpu_custom_call.1} parent=11 // pred_check_branch
          %184 = sbr.rel (%p182) target = $region20
        $region19: #{tpu_custom_call.1} parent=11 // pred_region
          _
        $region20: #{tpu_custom_call.1} parent=11 // pred_fallthru
          _
        // Predicated region
        $region21: #{tpu_custom_call.1} parent=11 // pred_check
          %p185 = pneg %p117
        $region22: #{tpu_custom_call.1} parent=11 // pred_check_branch
          %187 = sbr.rel (%p185) target = $region24
        $region23: #{tpu_custom_call.1} parent=11 // pred_region
          _
        $region24: #{tpu_custom_call.1} parent=11 // pred_fallthru
          _
        // Predicated region
        $region25: #{tpu_custom_call.1} parent=11 // pred_check
          %p188 = pneg %p138
        $region26: #{tpu_custom_call.1} parent=11 // pred_check_branch
          %190 = sbr.rel (%p188) target = $region28
        $region27: #{tpu_custom_call.1} parent=11 // pred_region
          _
        $region28: #{tpu_custom_call.1} parent=11 // pred_fallthru
          _
      $region12: #{tpu_custom_call.1} parent=5 // pred_fallthru
        _
      %p191 = scmp.lt.s32.totalorder %s14, 4
      // Predicated region
      $region29: #{tpu_custom_call.1} parent=5 // pred_check
        %p192 = pneg %p191
      $region30: #{tpu_custom_call.1} parent=5 // pred_check_branch
        %194 = sbr.rel (%p192) target = $region32
      $region31: #{tpu_custom_call.1} parent=5 // pred_region
        // Predicated region
        $region33: #{tpu_custom_call.1} parent=31 // pred_check
          %p195 = pneg %p48
        $region34: #{tpu_custom_call.1} parent=31 // pred_check_branch
          %197 = sbr.rel (%p195) target = $region36
        $region35: #{tpu_custom_call.1} parent=31 // pred_region
          %s198 = smul.u32 6, %s22
          %p199 = scmp.lt.s32.totalorder %s21, 1
          %s200 = scalar_select %p199, %s21, 1
          %p201 = scmp.lt.s32.totalorder %s198, 11
          %s202 = scalar_select %p201, %s198, 11
          %s203 = smul.addr %s200, 12
          %s204 = sadd.s32 %s202, %s203
          %s205 = smul.addr %s204, 4
          %s206 = scalar_lea.vmem %s0, %s205
          %s207 = smul.u32 6, %s22
        $region36: #{tpu_custom_call.1} parent=31 // pred_fallthru
          _
      $region32: #{tpu_custom_call.1} parent=5 // pred_fallthru
        _
      %p208 = scmp.le.s32.totalorder 1, %s14
      %p209 = scmp.lt.s32.totalorder %s14, 5
      %p210 = pnand %p208, %p209
      %p211 = pneg %p210
      // Predicated region
      $region37: #{tpu_custom_call.1} parent=5 // pred_check
        _
      $region38: #{tpu_custom_call.1} parent=5 // pred_check_branch
        %213 = sbr.rel (%p210) target = $region40
      $region39: #{tpu_custom_call.1} parent=5 // pred_region
        %s214 = ssub.s32 %s14, 1
        %s215 = smul.u32 6, %s24
        %p216 = scmp.lt.s32.totalorder %s23, 1
        %s217 = scalar_select %p216, %s23, 1
        %p218 = scmp.lt.s32.totalorder %s215, 11
        %s219 = scalar_select %p218, %s215, 11
        %s220 = smul.addr %s217, 12
        %s221 = sadd.s32 %s219, %s220
        %s222 = smul.addr %s221, 4
        %s223 = scalar_lea.vmem %s0, %s222
        %p224 = pneg %p54
        %p225 = pneg %p51
        %p226 = pneg %p75
        %p227 = pneg %p72
        %p228 = pneg %p96
        %p229 = pneg %p93
        %p230 = pneg %p117
        %p231 = pneg %p114
        %p232 = pneg %p138
        %p233 = pneg %p135
        %p234 = pneg %p164
        %p235 = pneg %p161
        %s236 = sand.u32 %s151, 1
        %s237 = scalar_lea.sflag [#allocation4], %s236
        %s238 = sand.u32 %s151, 1
        %s239 = scalar_lea.vmem [#allocation3], %s238
        %s240 = smul.u32 6, %s24
        %p241 = scmp.lt.s32.totalorder %s23, 1
        %s242 = scalar_select %p241, %s23, 1
        %p243 = scmp.lt.s32.totalorder %s240, 11
        %s244 = scalar_select %p243, %s240, 11
        %s245 = smul.addr %s242, 12
        %s246 = sadd.s32 %s244, %s245
        %s247 = smul.addr %s246, 4
        %s248 = scalar_lea.vmem %s0, %s247
        %s249 = smul.u32 6, %s24
        %p251 = scmp.eq.s32.totalorder %s24, 0
        // Predicated region
        $region41: #{tpu_custom_call.1} parent=39 // pred_check
          %p252 = pneg %p251
        $region42: #{tpu_custom_call.1} parent=39 // pred_check_branch
          %254 = sbr.rel (%p252) target = $region44
        $region43: #{tpu_custom_call.1} parent=39 // pred_region
          %255 = vst [vmem:[#allocation2] sm:$0xff] 0.0
        $region44: #{tpu_custom_call.1} parent=39 // pred_fallthru
          _
        %v256 = vld [vmem:[%s248] sm:$0xf]
        %v257 = vld [vmem:[%s248 + $0x4] sm:$0xf]
        %v258 = vld [vmem:[%s248 + $0x8] sm:$0xf]
        %v259 = vld [vmem:[%s248 + $0xc] sm:$0xf]
        %v260 = vld [vmem:[%s248 + $0x10] sm:$0xf]
        %v261 = vld [vmem:[%s248 + $0x14] sm:$0xf]
        %v262 = vld [vmem:[%s1] sm:$0xf]
        %v263 = vld [vmem:[%s1 + $0x4] sm:$0xf]
        %v264 = vld [vmem:[%s1 + $0x8] sm:$0xf]
        %v265 = vld [vmem:[%s1 + $0xc] sm:$0xf]
        %v266 = vld [vmem:[%s2] sm:$0x1]
        %v268 = vlaneseq
        %v269 = vshrl.u32 %v268, 7
        %v270 = vsub.s32 0, %v269
        %v271 = vrot.slane %v266, %v270
        %v279 = vunpack.c.l.b16 %v256
        %v280 = vunpack.c.l.b16 %v257
        %v281 = vunpack.c.l.b16 %v258
        %v282 = vunpack.c.l.b16 %v259
        %v283 = vunpack.c.l.b16 %v260
        %v284 = vunpack.c.l.b16 %v261
        %v285 = vpack.c.b16 %v280, %v279
        %v286 = vpack.c.b16 %v282, %v281
        %v287 = vpack.c.b16 %v284, %v283
        %v292 = vunpack.c.l.b16 %v262
        %v293 = vunpack.c.l.b16 %v263
        %v294 = vunpack.c.l.b16 %v264
        %v295 = vunpack.c.l.b16 %v265
        %v296 = vpack.c.b16 %v293, %v292
        %v297 = vpack.c.b16 %v295, %v294
        %vm300 = vcmask 261120
        %v302 = vsel %vm300, %v285, 0
        %v305 = vsel %vm300, %v286, 0
        %v308 = vsel %vm300, %v287, 0
        %310 = vmatprep.subr.bf16.mxu0 0
        %311 = vmatpush1.bf16.msra.mxu0 %v296
        %312 = vmatprep.subr.bf16.mxu0 0
        %313 = vmatpush1.bf16.msra.mxu0 %v297
        %314 = vmatprep.subr.bf16.mxu0 0
        %315 = vmatpush1.bf16.msra.mxu0 0
        %316 = vmatprep.subr.bf16.mxu0 0
        %317 = vmatpush1.bf16.msra.mxu0 0
        %318 = vmatprep.subr.bf16.mxu0 0
        %319 = vmatpush1.bf16.msra.mxu0 0
        %320 = vmatprep.subr.bf16.mxu0 0
        %321 = vmatpush1.bf16.msra.mxu0 0
        %322 = vmatprep.subr.bf16.mxu0 0
        %323 = vmatpush1.bf16.msra.mxu0 0
        %324 = vmatprep.subr.bf16.mxu0 0
        %325 = vmatpush1.bf16.msra.mxu0 0
        %326 = vmatprep.subr.bf16.mxu0 0
        %327 = vmatpush1.bf16.msra.mxu0 0
        %328 = vmatprep.subr.bf16.mxu0 0
        %329 = vmatpush1.bf16.msra.mxu0 0
        %330 = vmatprep.subr.bf16.mxu0 0
        %331 = vmatpush1.bf16.msra.mxu0 0
        %332 = vmatprep.subr.bf16.mxu0 0
        %333 = vmatpush1.bf16.msra.mxu0 0
        %334 = vmatprep.subr.bf16.mxu0 0
        %335 = vmatpush1.bf16.msra.mxu0 0
        %336 = vmatprep.subr.bf16.mxu0 0
        %337 = vmatpush1.bf16.msra.mxu0 0
        %338 = vmatprep.subr.bf16.mxu0 0
        %339 = vmatpush1.bf16.msra.mxu0 0
        %340 = vmatprep.subr.bf16.mxu0 0
        %341 = vmatpush1.bf16.msra.mxu0 0
        %342 = vmatprep.mubr.bf16.mxu0 0
        %343 = vmatmul.mubr.bf16.gmra.mrb[0].mxu0 %v302
        %v344 = vpop.f32.mrb[0].mxu0
        %v345 = vadd.f32 %v271, %v344
        %v346 = vpop.f32.mrb[0].mxu0
        %v347 = vpop.f32.mrb[0].mxu0
        %v348 = vadd.f32 %v271, %v347
        %v349 = vpop.f32.mrb[0].mxu0
        %350 = vmatprep.mubr.bf16.mxu0 0
        %351 = vmatmul.mubr.bf16.gmra.mrb[0].mxu0 %v305
        %v352 = vpop.f32.mrb[0].mxu0
        %v353 = vadd.f32 %v271, %v352
        %v354 = vpop.f32.mrb[0].mxu0
        %v355 = vpop.f32.mrb[0].mxu0
        %v356 = vadd.f32 %v271, %v355
        %v357 = vpop.f32.mrb[0].mxu0
        %358 = vmatprep.mubr.bf16.mxu0 0
        %359 = vmatmul.mubr.bf16.gmra.mrb[0].mxu0 %v308
        %v360 = vpop.f32.mrb[0].mxu0
        %v361 = vadd.f32 %v271, %v360
        %v362 = vpop.f32.mrb[0].mxu0
        %v363 = vpop.f32.mrb[0].mxu0
        %v364 = vadd.f32 %v271, %v363
        %v365 = vpop.f32.mrb[0].mxu0
        %366 = vdwg.mxu0
        %v367 = vxor.u32 %v345, 2147483648
        %v368 = vxor.u32 %v348, 2147483648
        %v369 = vxor.u32 %v353, 2147483648
        %v370 = vxor.u32 %v356, 2147483648
        %v371 = vxor.u32 %v361, 2147483648
        %v372 = vxor.u32 %v364, 2147483648
        %v373 = vmul.f32 %v367, 1.442695
        %v374 = vpow.pop %v373
        %v375 = vmul.f32 %v368, 1.442695
        %v376 = vpow.pop %v375
        %v377 = vmul.f32 %v369, 1.442695
        %v378 = vpow.pop %v377
        %v379 = vmul.f32 %v370, 1.442695
        %v380 = vpow.pop %v379
        %v381 = vmul.f32 %v371, 1.442695
        %v382 = vpow.pop %v381
        %v383 = vmul.f32 %v372, 1.442695
        %v384 = vpow.pop %v383
        %v385 = vadd.f32 %v374, 1.0
        %v386 = vadd.f32 %v376, 1.0
        %v387 = vadd.f32 %v378, 1.0
        %v388 = vadd.f32 %v380, 1.0
        %v389 = vadd.f32 %v382, 1.0
        %v390 = vadd.f32 %v384, 1.0
        %v391 = vrcp.pop %v385
        %v392 = vmul.f32 1.0, %v391
        %v393 = vrcp.pop %v386
        %v394 = vmul.f32 1.0, %v393
        %v395 = vrcp.pop %v387
        %v396 = vmul.f32 1.0, %v395
        %v397 = vrcp.pop %v388
        %v398 = vmul.f32 1.0, %v397
        %v399 = vrcp.pop %v389
        %v400 = vmul.f32 1.0, %v399
        %v401 = vrcp.pop %v390
        %v402 = vmul.f32 1.0, %v401
        %v403 = vmul.f32 %v345, %v392
        %v404 = vmul.f32 %v348, %v394
        %v405 = vmul.f32 %v353, %v396
        %v406 = vmul.f32 %v356, %v398
        %v407 = vmul.f32 %v361, %v400
        %v408 = vmul.f32 %v364, %v402
        %v409 = vld [vmem:[#allocation2] sm:$0xff]
        %v410 = vadd.f32 %v403, %v404
        %v411 = vadd.f32 %v410, %v405
        %v412 = vadd.f32 %v411, %v406
        %v413 = vadd.f32 %v412, %v407
        %v414 = vadd.f32 %v413, %v408
        %v415 = vadd.f32 %v409, %v414
        %416 = vst [vmem:[#allocation2] sm:$0xff] %v415
        %p417 = scmp.eq.s32.totalorder %s24, 1
        // Predicated region
        $region45: #{tpu_custom_call.1} parent=39 // pred_check
          %p418 = pneg %p417
        $region46: #{tpu_custom_call.1} parent=39 // pred_check_branch
          %420 = sbr.rel (%p418) target = $region48
        $region47: #{tpu_custom_call.1} parent=39 // pred_region
          %v421 = vld [vmem:[#allocation2] sm:$0xff]
          %v422 = vrot.slane %v421, 4
          %v423 = vadd.f32 %v421, %v422
          %v424 = vrot.slane %v423, 2
          %v425 = vadd.f32 %v423, %v424
          %v426 = vrot.slane %v425, 1
          %v427 = vadd.f32 %v425, %v426
          %v428 = vmul.f32 %v427, 0.015625
          %v429 = vld [vmem:[%s3] sm:$0xf]
          %v430 = vld [vmem:[%s3 + $0x4] sm:$0xf]
          %v431 = vld [vmem:[%s3 + $0x8] sm:$0xf]
          %v432 = vld [vmem:[%s3 + $0xc] sm:$0xf]
          %v433 = vld [vmem:[%s3 + $0x10] sm:$0xf]
          %v434 = vld [vmem:[%s3 + $0x14] sm:$0xf]
          %v435 = vld [vmem:[%s3 + $0x18] sm:$0xf]
          %v436 = vld [vmem:[%s3 + $0x1c] sm:$0xf]
          %v437 = vld [vmem:[%s3 + $0x20] sm:$0xf]
          %v438 = vld [vmem:[%s3 + $0x24] sm:$0xf]
          %v439 = vld [vmem:[%s3 + $0x28] sm:$0xf]
          %v440 = vld [vmem:[%s3 + $0x2c] sm:$0xf]
          %v441 = vld [vmem:[%s3 + $0x30] sm:$0xf]
          %v442 = vld [vmem:[%s3 + $0x34] sm:$0xf]
          %v443 = vld [vmem:[%s3 + $0x38] sm:$0xf]
          %v444 = vld [vmem:[%s3 + $0x3c] sm:$0xf]
          %v445 = vunpack.c.l.bf16 %v429
          %v446 = vunpack.c.l.bf16 %v430
          %v447 = vunpack.c.l.bf16 %v431
          %v448 = vunpack.c.l.bf16 %v432
          %v449 = vunpack.c.l.bf16 %v433
          %v450 = vunpack.c.l.bf16 %v434
          %v451 = vunpack.c.l.bf16 %v435
          %v452 = vunpack.c.l.bf16 %v436
          %v453 = vunpack.c.l.bf16 %v437
          %v454 = vunpack.c.l.bf16 %v438
          %v455 = vunpack.c.l.bf16 %v439
          %v456 = vunpack.c.l.bf16 %v440
          %v457 = vunpack.c.l.bf16 %v441
          %v458 = vunpack.c.l.bf16 %v442
          %v459 = vunpack.c.l.bf16 %v443
          %v460 = vunpack.c.l.bf16 %v444
          %v461 = vld [vmem:[%s4] sm:$0x1]
          %462 = vmatprep.subr.mxu0 0.0
          %463 = vmatpush1.msra.mxu0 %v445
          %464 = vmatprep.subr.mxu0 0.0
          %465 = vmatpush1.msra.mxu0 %v446
          %466 = vmatprep.subr.mxu0 0.0
          %467 = vmatpush1.msra.mxu0 %v447
          %468 = vmatprep.subr.mxu0 0.0
          %469 = vmatpush1.msra.mxu0 %v448
          %470 = vmatprep.subr.mxu0 0.0
          %471 = vmatpush1.msra.mxu0 %v449
          %472 = vmatprep.subr.mxu0 0.0
          %473 = vmatpush1.msra.mxu0 %v450
          %474 = vmatprep.subr.mxu0 0.0
          %475 = vmatpush1.msra.mxu0 %v451
          %476 = vmatprep.subr.mxu0 0.0
          %477 = vmatpush1.msra.mxu0 %v452
          %478 = vmatprep.subr.mxu0 0.0
          %479 = vmatpush1.msra.mxu0 %v453
          %480 = vmatprep.subr.mxu0 0.0
          %481 = vmatpush1.msra.mxu0 %v454
          %482 = vmatprep.subr.mxu0 0.0
          %483 = vmatpush1.msra.mxu0 %v455
          %484 = vmatprep.subr.mxu0 0.0
          %485 = vmatpush1.msra.mxu0 %v456
          %486 = vmatprep.subr.mxu0 0.0
          %487 = vmatpush1.msra.mxu0 %v457
          %488 = vmatprep.subr.mxu0 0.0
          %489 = vmatpush1.msra.mxu0 %v458
          %490 = vmatprep.subr.mxu0 0.0
          %491 = vmatpush1.msra.mxu0 %v459
          %492 = vmatprep.subr.mxu0 0.0
          %493 = vmatpush1.msra.mxu0 %v460
          %494 = vmatprep.subr.mxu0 0.0
          %495 = vmatpush1.msra.mxu0 0.0
          %496 = vmatprep.subr.mxu0 0.0
          %497 = vmatpush1.msra.mxu0 0.0
          %498 = vmatprep.subr.mxu0 0.0
          %499 = vmatpush1.msra.mxu0 0.0
          %500 = vmatprep.subr.mxu0 0.0
          %501 = vmatpush1.msra.mxu0 0.0
          %502 = vmatprep.subr.mxu0 0.0
          %503 = vmatpush1.msra.mxu0 0.0
          %504 = vmatprep.subr.mxu0 0.0
          %505 = vmatpush1.msra.mxu0 0.0
          %506 = vmatprep.subr.mxu0 0.0
          %507 = vmatpush1.msra.mxu0 0.0
          %508 = vmatprep.subr.mxu0 0.0
          %509 = vmatpush1.msra.mxu0 0.0
          %510 = vmatprep.subr.mxu0 0.0
          %511 = vmatpush1.msra.mxu0 0.0
          %512 = vmatprep.subr.mxu0 0.0
          %513 = vmatpush1.msra.mxu0 0.0
          %514 = vmatprep.subr.mxu0 0.0
          %515 = vmatpush1.msra.mxu0 0.0
          %516 = vmatprep.subr.mxu0 0.0
          %517 = vmatpush1.msra.mxu0 0.0
          %518 = vmatprep.subr.mxu0 0.0
          %519 = vmatpush1.msra.mxu0 0.0
          %520 = vmatprep.subr.mxu0 0.0
          %521 = vmatpush1.msra.mxu0 0.0
          %522 = vmatprep.subr.mxu0 0.0
          %523 = vmatpush1.msra.mxu0 0.0
          %524 = vmatprep.subr.mxu0 0.0
          %525 = vmatpush1.msra.mxu0 0.0
          %526 = vmatprep.mubr.f32.mxu0 0.0
          %527 = vmatmul.mubr.f32.gmra.mrb[0].mxu0 %v428
          %v528 = vpop.f32.mrb[0].mxu0
          %v529 = vadd.f32 %v461, %v528
          %v530 = vpop.f32.mrb[0].mxu0
          %531 = vdwg.mxu0
          %532 = vst [vmem:[%s239] sm:$0x1] %v529
        $region48: #{tpu_custom_call.1} parent=39 // pred_fallthru
          _
        %s533 = sand.u32 %s151, 1
        %s534 = scalar_lea.sflag [#allocation4], %s533
        %s535 = sand.u32 %s151, 1
        %s536 = scalar_lea.vmem [#allocation3], %s535
        // Predicated region
        $region49: #{tpu_custom_call.1} parent=39 // pred_check
          %p537 = pneg %p161
        $region50: #{tpu_custom_call.1} parent=39 // pred_check_branch
          %539 = sbr.rel (%p537) target = $region52
        $region51: #{tpu_custom_call.1} parent=39 // pred_region
          %s541 = ssub.s32 16, 16
          %542 = vsyncadd %s534, %s541
          %s543 = smul.addr %s23, 16
          %s544 = scalar_lea.hbm %s5, %s543
          %s546 = sshll.u32 %s536, 4
          %s547 = int_to_ptr.vmem [resolvable:$true] %s546
          %549 = dma.vmem_to_hbm [thread:$0]  %s547, 16, %s544, %s534
        $region52: #{tpu_custom_call.1} parent=39 // pred_fallthru
          _
      $region40: #{tpu_custom_call.1} parent=5 // pred_fallthru
        _
      %p550 = scmp.le.s32.totalorder 2, %s14
      // Predicated region
      $region53: #{tpu_custom_call.1} parent=5 // pred_check
        %p551 = pneg %p550
      $region54: #{tpu_custom_call.1} parent=5 // pred_check_branch
        %553 = sbr.rel (%p551) target = $region56
      $region55: #{tpu_custom_call.1} parent=5 // pred_region
        %s554 = ssub.s32 %s14, 2
        // Predicated region
        $region57: #{tpu_custom_call.1} parent=55 // pred_check
          %p555 = pneg %p167
        $region58: #{tpu_custom_call.1} parent=55 // pred_check_branch
          %557 = sbr.rel (%p555) target = $region60
        $region59: #{tpu_custom_call.1} parent=55 // pred_region
          %s558 = sand.u32 %s152, 1
          %s559 = scalar_lea.sflag [#allocation4], %s558
          %s560 = sand.u32 %s152, 1
          %s561 = scalar_lea.vmem [#allocation3], %s560
          %562 = dma.done %s559, 16
        $region60: #{tpu_custom_call.1} parent=55 // pred_fallthru
          _
      $region56: #{tpu_custom_call.1} parent=5 // pred_fallthru
        _
    $region6: #{tpu_custom_call.1} parent=1 // loop_footer
      %s18 = sadd.s32 1, %s14
    $region7: #{tpu_custom_call.1} parent=1 // loop_footer_branch
      %13 = sbr.rel target = $region3
    $region8: #{tpu_custom_call.1} parent=1 // loop_exit
      _
    %563 = vsyncpa [#allocation4], 1
    %s564 = scalar_lea.sflag [#allocation4], 1
    %565 = vsyncpa %s564, 1

</llo_original>
